<compile_context>
chip_gen: v5e
topology: v5e:2x2
jax: 0.10.0
libtpu: 0.0.40
codegen_flags: <defaults>
</compile_context>

<pallas_src>
import jax
import jax.numpy as jnp
from jax.experimental import pallas as pl
from jax.experimental.pallas import tpu as pltpu


def mlp_g_dec_kernel(x_ref, w12_ref, b12_ref, w3_ref, b3_ref, o_ref):
    """One batch-tile of the 3-layer MLP generator/decoder.

    x_ref    : (tile, din_p)        concat([noise,iou,att]) zero-padded to 128 lanes
    w12_ref  : (din_p+ngh_p, ngh_p) [W1_padded ; W2_padded] stacked on K
    b12_ref  : (2, ngh_p) f32       row 0 = b1, row 1 = b2
    w3_ref   : (ngh_p, res)
    b3_ref   : (1, res) f32
    """
    din_p = x_ref.shape[1]        # static: padded concat width (128)
    ngh_p = w3_ref.shape[0]       # static: padded hidden width (128)
    mm_dtype = w12_ref.dtype

    # fc1 + LeakyReLU(0.2): single lane-dense dot, f32 accumulate on the MXU.
    z1 = jnp.dot(x_ref[...], w12_ref[0:din_p, :],
                 preferred_element_type=jnp.float32)
    z1 = z1 + b12_ref[0:1, :]
    a1 = jnp.maximum(z1, 0.2 * z1)                 # LeakyReLU(0.2)

    # fc2 + ReLU
    z2 = jnp.dot(a1.astype(mm_dtype), w12_ref[din_p:din_p + ngh_p, :],
                 preferred_element_type=jnp.float32)
    z2 = z2 + b12_ref[1:2, :]
    a2 = jnp.maximum(z2, 0.0)

    # fc3 + ReLU
    z3 = jnp.dot(a2.astype(w3_ref.dtype), w3_ref[...],
                 preferred_element_type=jnp.float32) + b3_ref[...]
    o_ref[...] = jnp.maximum(z3, 0.0).astype(o_ref.dtype)


def init_params(key, nz, iou_size, att_size, ngh, res_size, dtype=jnp.float32):
    """weights_init: Linear weights ~ N(0, 0.02), biases = 0.

    Weights stored transposed vs PyTorch, i.e. (in, out), so the kernel
    computes h @ W + b directly on the MXU.
    """
    k1, k2, k3 = jax.random.split(key, 3)
    din = nz + iou_size + att_size
    w1 = 0.02 * jax.random.normal(k1, (din, ngh), dtype)
    b1 = jnp.zeros((ngh,), dtype)
    w2 = 0.02 * jax.random.normal(k2, (ngh, ngh), dtype)
    b2 = jnp.zeros((ngh,), dtype)
    w3 = 0.02 * jax.random.normal(k3, (ngh, res_size), dtype)
    b3 = jnp.zeros((res_size,), dtype)
    return (w1, b1, w2, b2, w3, b3)


def prepare_params(params, *, matmul_dtype=jnp.bfloat16, lane=128):
    """One-time weight preprocessing.

    * zero-pads the concat width and hidden width up to multiples of 128
      (lane-dense activations everywhere) — exact, padded rows/lanes stay 0.
    * stacks padded W1/W2 into one (256,128) slab and b1/b2 into one (2,128)
      f32 slab so the kernel takes 4 weight refs instead of 8.
    * casts weights to the MXU input dtype (bf16 by default); biases stay f32
      since the bias add / activations run in f32.
    """
    w1, b1, w2, b2, w3, b3 = params
    din, ngh = w1.shape
    res = w3.shape[1]
    rnd = lambda n: ((n + lane - 1) // lane) * lane
    din_p, ngh_p = rnd(din), rnd(ngh)

    w1p = jnp.zeros((din_p, ngh_p), matmul_dtype).at[:din, :ngh].set(
        w1.astype(matmul_dtype))
    w2p = jnp.zeros((ngh_p, ngh_p), matmul_dtype).at[:ngh, :ngh].set(
        w2.astype(matmul_dtype))
    w12 = jnp.concatenate([w1p, w2p], axis=0)          # (din_p+ngh_p, ngh_p)

    b12 = jnp.zeros((2, ngh_p), jnp.float32)
    b12 = b12.at[0, :ngh].set(b1.reshape(-1).astype(jnp.float32))
    b12 = b12.at[1, :ngh].set(b2.reshape(-1).astype(jnp.float32))

    w3p = jnp.zeros((ngh_p, res), matmul_dtype).at[:ngh, :].set(
        w3.astype(matmul_dtype))
    b3p = b3.reshape(1, res).astype(jnp.float32)

    return dict(w12=w12, b12=b12, w3=w3p, b3=b3p, din=din, din_p=din_p)


def _pick_batch_tile(B, cap=2048):
    """Largest divisor of B (multiple of 8) up to `cap`.

    Prefer an even (>=2) grid step count so the "parallel" batch axis can
    shard evenly across the 2 TensorCores on v7x; fall back to the largest
    divisor, then to the whole batch.
    """
    half = B // 2
    for t in range(min(cap, half), 7, -1):
        if B % t == 0 and t % 8 == 0 and (B // t) % 2 == 0:
            return t
    for t in range(min(cap, B), 7, -1):
        if B % t == 0 and t % 8 == 0:
            return t
    return B


def mlp_g_baseline_dec(noise, iou, att, prepared, *, batch_tile=None,
                       out_dtype=jnp.float32):
    """JAX wrapper: batch-tiled Pallas call over the fused 3-layer MLP."""
    w12, b12, w3, b3 = prepared["w12"], prepared["b12"], prepared["w3"], prepared["b3"]
    din, din_p = prepared["din"], prepared["din_p"]
    mm_dtype = w12.dtype

    B = noise.shape[0]
    res = w3.shape[1]
    assert noise.shape[1] + iou.shape[1] + att.shape[1] == din

    if batch_tile is None:
        batch_tile = _pick_batch_tile(B)
    assert B % batch_tile == 0, "batch must be divisible by batch_tile"

    # Single fused XLA op on the input side: concat + zero-pad K to 128 +
    # cast to the MXU dtype (no separate standalone cast pass over HBM).
    x = jnp.concatenate([noise, iou, att], axis=1)
    x = jnp.pad(x, ((0, 0), (0, din_p - din))).astype(mm_dtype)

    def whole(arr):
        # Constant block index across the grid -> slab stays VMEM-resident.
        return pl.BlockSpec(arr.shape, lambda i: (0, 0))

    return pl.pallas_call(
        mlp_g_dec_kernel,
        out_shape=jax.ShapeDtypeStruct((B, res), out_dtype),
        grid_spec=pltpu.PrefetchScalarGridSpec(
            num_scalar_prefetch=0,
            grid=(B // batch_tile,),
            in_specs=[
                pl.BlockSpec((batch_tile, din_p), lambda i: (i, 0)),  # x tile
                whole(w12), whole(b12), whole(w3), whole(b3),
            ],
            out_specs=pl.BlockSpec((batch_tile, res), lambda i: (i, 0)),
        ),
        compiler_params=pltpu.CompilerParams(
            # Batch axis is embarrassingly parallel -> megacore sharding on v7x.
            dimension_semantics=("parallel",),
        ),
    )(x, w12, b12, w3, b3)


def reference_forward(noise, iou, att, params):
    """Pure-JAX f32 reference matching the PyTorch forward (HIGHEST precision)."""
    w1, b1, w2, b2, w3, b3 = params
    hp = jax.lax.Precision.HIGHEST
    h = jnp.concatenate([noise, iou, att], axis=1)
    h = jnp.dot(h, w1, precision=hp) + b1
    h = jnp.where(h > 0, h, 0.2 * h)                        # LeakyReLU(0.2)
    h = jnp.maximum(jnp.dot(h, w2, precision=hp) + b2, 0.0)  # ReLU
    h = jnp.maximum(jnp.dot(h, w3, precision=hp) + b3, 0.0)  # ReLU
    return h


if __name__ == "__main__":
    # Forward-consistent shapes (concat -> 32 input features, ngh=64, res=128).
    B = 512
    nz, iou_size, att_size = 16, 8, 8
    ngh, res_size = 64, 128

    key = jax.random.PRNGKey(0)
    k_n, k_i, k_a, k_p = jax.random.split(key, 4)

    noise = jax.random.normal(k_n, (B, nz), jnp.float32)
    iou = jax.random.normal(k_i, (B, iou_size), jnp.float32)
    att = jax.random.normal(k_a, (B, att_size), jnp.float32)
    params = init_params(k_p, nz, iou_size, att_size, ngh, res_size)

    ref = reference_forward(noise, iou, att, params)

    # --- exact-path check: f32 MXU, same math as the HIGHEST-precision ref ---
    prep_f32 = prepare_params(params, matmul_dtype=jnp.float32)
    out_f32 = jax.block_until_ready(mlp_g_baseline_dec(noise, iou, att, prep_f32))
    assert out_f32.shape == (B, res_size), out_f32.shape
    assert jnp.allclose(out_f32, ref, atol=1e-4, rtol=1e-4), "f32 mismatch vs reference"

    # --- fast path: bf16 MXU inputs, f32 accumulate (v6e/v7x throughput) ---
    prep_bf16 = prepare_params(params, matmul_dtype=jnp.bfloat16)
    out_bf16 = jax.block_until_ready(mlp_g_baseline_dec(noise, iou, att, prep_bf16))
    assert out_bf16.shape == (B, res_size), out_bf16.shape
    assert jnp.allclose(out_bf16, ref, atol=5e-3, rtol=5e-2), "bf16 mismatch vs reference"

    print("KERNEL_OK")
</pallas_src>

<mosaic_0001>
module attributes {stable_mosaic.version = 11 : i64} {
  func.func @mlp_g_dec_kernel(%arg0: i32, %arg1: memref<256x128xf32, #tpu.memory_space<vmem>>, %arg2: memref<256x128xf32, #tpu.memory_space<vmem>>, %arg3: memref<2x128xf32, #tpu.memory_space<vmem>>, %arg4: memref<128x128xf32, #tpu.memory_space<vmem>>, %arg5: memref<1x128xf32, #tpu.memory_space<vmem>>, %arg6: memref<256x128xf32, #tpu.memory_space<vmem>>) attributes {dimension_semantics = [#tpu.dimension_semantics<parallel>], iteration_bounds = array<i64: 2>, scalar_prefetch = 0 : i64, scratch_operands = 0 : i64, tpu.core_type = #tpu.core_type<tc>, window_params = [{transform_indices = @transform_0, window_bounds = array<i64: 256, 128>}, {pipeline_mode = #tpu.pipeline_mode<synchronous>, transform_indices = @transform_1, window_bounds = array<i64: 256, 128>}, {pipeline_mode = #tpu.pipeline_mode<synchronous>, transform_indices = @transform_2, window_bounds = array<i64: 2, 128>}, {pipeline_mode = #tpu.pipeline_mode<synchronous>, transform_indices = @transform_3, window_bounds = array<i64: 128, 128>}, {pipeline_mode = #tpu.pipeline_mode<synchronous>, transform_indices = @transform_4, window_bounds = array<i64: 1, 128>}, {transform_indices = @transform_5, window_bounds = array<i64: 256, 128>}]} {
    %c0 = arith.constant 0 : index
    %c0_0 = arith.constant 0 : index
    %0 = vector.load %arg1[%c0, %c0_0] : memref<256x128xf32, #tpu.memory_space<vmem>>, vector<256x128xf32>
    %c0_1 = arith.constant 0 : index
    %c0_2 = arith.constant 0 : index
    %1 = vector.load %arg2[%c0_1, %c0_2] : memref<256x128xf32, #tpu.memory_space<vmem>>, vector<128x128xf32>
    %cst = arith.constant dense<0.000000e+00> : vector<256x128xf32>
    %2 = tpu.matmul %0, %1, %cst {dimension_numbers = #tpu.dot_dimension_numbers<[1], [0], [0], [1], [0, 0, 1, 1], [], []>} : vector<256x128xf32>, vector<128x128xf32>, vector<256x128xf32> -> vector<256x128xf32>
    %c0_3 = arith.constant 0 : index
    %c0_4 = arith.constant 0 : index
    %3 = vector.load %arg3[%c0_3, %c0_4] : memref<2x128xf32, #tpu.memory_space<vmem>>, vector<1x128xf32>
    %4 = vector.broadcast %3 : vector<1x128xf32> to vector<256x128xf32>
    %5 = arith.addf %2, %4 : vector<256x128xf32>
    %cst_5 = arith.constant 2.000000e-01 : f32
    %6 = vector.broadcast %cst_5 : f32 to vector<256x128xf32>
    %7 = arith.mulf %6, %5 : vector<256x128xf32>
    %8 = arith.maximumf %5, %7 : vector<256x128xf32>
    %c128 = arith.constant 128 : index
    %c0_6 = arith.constant 0 : index
    %9 = vector.load %arg2[%c128, %c0_6] : memref<256x128xf32, #tpu.memory_space<vmem>>, vector<128x128xf32>
    %cst_7 = arith.constant dense<0.000000e+00> : vector<256x128xf32>
    %10 = tpu.matmul %8, %9, %cst_7 {dimension_numbers = #tpu.dot_dimension_numbers<[1], [0], [0], [1], [0, 0, 1, 1], [], []>} : vector<256x128xf32>, vector<128x128xf32>, vector<256x128xf32> -> vector<256x128xf32>
    %c1 = arith.constant 1 : index
    %c0_8 = arith.constant 0 : index
    %11 = vector.load %arg3[%c1, %c0_8] : memref<2x128xf32, #tpu.memory_space<vmem>>, vector<1x128xf32>
    %12 = vector.broadcast %11 : vector<1x128xf32> to vector<256x128xf32>
    %13 = arith.addf %10, %12 : vector<256x128xf32>
    %cst_9 = arith.constant 0.000000e+00 : f32
    %14 = vector.broadcast %cst_9 : f32 to vector<256x128xf32>
    %15 = arith.maximumf %13, %14 : vector<256x128xf32>
    %c0_10 = arith.constant 0 : index
    %c0_11 = arith.constant 0 : index
    %16 = vector.load %arg4[%c0_10, %c0_11] : memref<128x128xf32, #tpu.memory_space<vmem>>, vector<128x128xf32>
    %cst_12 = arith.constant dense<0.000000e+00> : vector<256x128xf32>
    %17 = tpu.matmul %15, %16, %cst_12 {dimension_numbers = #tpu.dot_dimension_numbers<[1], [0], [0], [1], [0, 0, 1, 1], [], []>} : vector<256x128xf32>, vector<128x128xf32>, vector<256x128xf32> -> vector<256x128xf32>
    %c0_13 = arith.constant 0 : index
    %c0_14 = arith.constant 0 : index
    %18 = vector.load %arg5[%c0_13, %c0_14] : memref<1x128xf32, #tpu.memory_space<vmem>>, vector<1x128xf32>
    %19 = vector.broadcast %18 : vector<1x128xf32> to vector<256x128xf32>
    %20 = arith.addf %17, %19 : vector<256x128xf32>
    %cst_15 = arith.constant 0.000000e+00 : f32
    %21 = vector.broadcast %cst_15 : f32 to vector<256x128xf32>
    %22 = arith.maximumf %20, %21 : vector<256x128xf32>
    %c0_16 = arith.constant 0 : index
    %c0_17 = arith.constant 0 : index
    %23 = vector.load %arg6[%c0_16, %c0_17] : memref<256x128xf32, #tpu.memory_space<vmem>>, vector<256x128xf32>
    tpu.vector_store %arg6[%c0_16, %c0_17], %22 {strides = array<i32>} : memref<256x128xf32, #tpu.memory_space<vmem>>, vector<256x128xf32>,
    return
  }
  func.func @transform_0(%arg0: i32) -> (i32, i32) {
    %c0_i32 = arith.constant 0 : i32
    %c0_i32_0 = arith.constant 0 : i32
    return %arg0, %c0_i32 : i32, i32
  }
  func.func @transform_1(%arg0: i32) -> (i32, i32) {
    %c0_i32 = arith.constant 0 : i32
    %c0_i32_0 = arith.constant 0 : i32
    %c0_i32_1 = arith.constant 0 : i32
    return %c0_i32, %c0_i32_0 : i32, i32
  }
  func.func @transform_2(%arg0: i32) -> (i32, i32) {
    %c0_i32 = arith.constant 0 : i32
    %c0_i32_0 = arith.constant 0 : i32
    %c0_i32_1 = arith.constant 0 : i32
    return %c0_i32, %c0_i32_0 : i32, i32
  }
  func.func @transform_3(%arg0: i32) -> (i32, i32) {
    %c0_i32 = arith.constant 0 : i32
    %c0_i32_0 = arith.constant 0 : i32
    %c0_i32_1 = arith.constant 0 : i32
    return %c0_i32, %c0_i32_0 : i32, i32
  }
  func.func @transform_4(%arg0: i32) -> (i32, i32) {
    %c0_i32 = arith.constant 0 : i32
    %c0_i32_0 = arith.constant 0 : i32
    %c0_i32_1 = arith.constant 0 : i32
    return %c0_i32, %c0_i32_0 : i32, i32
  }
  func.func @transform_5(%arg0: i32) -> (i32, i32) {
    %c0_i32 = arith.constant 0 : i32
    %c0_i32_0 = arith.constant 0 : i32
    return %arg0, %c0_i32 : i32, i32
  }
}

</mosaic_0001>

<llo_original>
// kernel: tpu_custom_call.1
$region0: #{tpu_custom_call.1}
  #allocation0 [shape = 'u32[]', space=smem, size = 0x4, offset = 0x4, fixed_abs, tag = 'smem constant byte address 0x4 - core index']
  #allocation1 [shape = 'u32[72,128]{1,0:T(1,128)}', space=vmem, size = 0x9000, scoped, tag = 'internal scratch']
  %s0 = inlined_call_operand.hbm [shape: f32[512,128], index: 0, kind: input, shape index: {}]
  %s1 = inlined_call_operand.hbm [shape: f32[256,128], index: 1, kind: input, shape index: {}]
  %s2 = inlined_call_operand.hbm [shape: f32[2,128], index: 2, kind: input, shape index: {}]
  %s3 = inlined_call_operand.hbm [shape: f32[128,128], index: 3, kind: input, shape index: {}]
  %s4 = inlined_call_operand.vmem [shape: f32[1,128], index: 4, kind: input, shape index: {}]
  %s5 = inlined_call_operand.hbm [shape: f32[512,128], index: 5, kind: output, shape index: {}]
  %s6 = sld [smem:[#allocation0]]
  $region69: #{tpu_custom_call.1} parent=0
    _
  %s8 = ssub.s32 1, %s6
  %s9 = scalar_select 0, %s8, %s6
  $region1: #{tpu_custom_call.1} parent=0
    #allocation2 [shape = 'u8[262144]{0}', space=vmem, size = 0x40000, scoped, tag = 'input window, operand 0']
    #allocation3 [shape = 's32[2]{0}', space=sflag, size = 0x8, scoped, tag = 'scoped memory for tpu_custom_call.1']
    #allocation4 [shape = 's32[2]{0}', space=sflag, size = 0x8, scoped, tag = 'scoped memory for tpu_custom_call.1']
    #allocation5 [shape = 'u8[131072]{0}', space=vmem, size = 0x20000, scoped, tag = 'input window, operand 1, single buffered']
    #allocation6 [shape = 's32[1]{0}', space=sflag, size = 0x4, scoped, tag = 'scoped memory for tpu_custom_call.1']
    #allocation7 [shape = 'u8[1024]{0}', space=vmem, size = 0x400, scoped, tag = 'input window, operand 2, single buffered']
    #allocation8 [shape = 'u8[65536]{0}', space=vmem, size = 0x10000, scoped, tag = 'input window, operand 3, single buffered']
    #allocation9 [shape = 's32[1]{0}', space=sflag, size = 0x4, scoped, tag = 'scoped memory for tpu_custom_call.1']
    #allocation10 [shape = 'u8[262144]{0}', space=vmem, size = 0x40000, scoped, tag = 'output window, operand 0']
    %10 = vsyncpa [#allocation3], 0
    %s11 = scalar_lea.sflag [#allocation3], 1
    %12 = vsyncpa %s11, 0
    %13 = vsyncpa [#allocation6], 0
    %14 = vsyncpa [#allocation9], 0
    %15 = vsyncpa [#allocation4], 0
    %s16 = scalar_lea.sflag [#allocation4], 1
    %17 = vsyncpa %s16, 0
    loop: start=0, step=1, limit=4
    $region2: #{tpu_custom_call.1} parent=1 // loop_pre_header
      _
    $region3: #{tpu_custom_call.1} parent=1 // loop_header
      %s19 = sphi 0, %s23
      %p20 = scmp.ge.s32.totalorder %s19, 4
      %s29 = sphi 0, %s31
      %s32 = sphi 0, %s29
      %s33 = sphi 0, %s32
      %s49 = sphi 0, %s33
      %s53 = sphi 0, %s53
      %s55 = sphi 0, %s53
      %s56 = sphi 0, %s55
      %s70 = sphi 0, %s56
      %s74 = sphi 0, %s74
      %s76 = sphi 0, %s74
      %s77 = sphi 0, %s76
      %s91 = sphi 0, %s77
      %s95 = sphi 0, %s95
      %s97 = sphi 0, %s95
      %s98 = sphi 0, %s97
      %s112 = sphi 0, %s98
      %s116 = sphi 0, %s116
      %s118 = sphi 0, %s116
      %s119 = sphi 0, %s118
      %s133 = sphi 0, %s119
      %s139 = sphi 0, %s141
      %s142 = sphi 0, %s139
      %s143 = sphi 0, %s142
      %s159 = sphi 0, %s143
    $region4: #{tpu_custom_call.1} parent=1 // loop_header_branch
      %22 = sbr.rel (%p20) target = $region8
    $region5: #{tpu_custom_call.1} parent=1 // loop_body
      %s24 = ssub.s32 %s19, 1
      %s25 = ssub.s32 %s19, 2
      %s26 = sadd.s32 %s19, 1
      %s27 = ssub.s32 %s19, %s26
      %p28 = scmp.eq.s32.totalorder %s27, 0
      %s30 = sadd.s32 %s29, 1
      %s31 = scalar_select %p28, %s29, %s30
      %p34 = pneg %p28
      %p35 = scmp.eq.s32.totalorder %s19, 1
      %p36 = por %p34, %p35
      %p37 = scmp.ne.s32.totalorder %s29, %s32
      %p38 = scmp.eq.s32.totalorder %s19, 0
      %p39 = por %p37, %p38
      %p40 = scmp.ne.s32.totalorder %s29, %s32
      %p41 = scmp.eq.s32.totalorder %s24, 1
      %p42 = por %p40, %p41
      %p43 = scmp.ne.s32.totalorder %s32, %s33
      %p44 = scmp.eq.s32.totalorder %s24, 0
      %p45 = por %p43, %p44
      %p46 = scmp.ne.s32.totalorder %s32, %s33
      %p47 = scmp.eq.s32.totalorder %s25, 1
      %p48 = por %p46, %p47
      %p50 = scmp.ne.s32.totalorder %s33, %s49
      %p51 = scmp.eq.s32.totalorder %s25, 0
      %p52 = por %p50, %p51
      %s54 = sadd.s32 %s53, 1
      %p57 = scmp.eq.s32.totalorder %s19, 1
      %p58 = scmp.ne.s32.totalorder %s53, %s55
      %p59 = scmp.eq.s32.totalorder %s19, 0
      %p60 = por %p58, %p59
      %p61 = scmp.ne.s32.totalorder %s53, %s55
      %p62 = scmp.eq.s32.totalorder %s24, 1
      %p63 = por %p61, %p62
      %p64 = scmp.ne.s32.totalorder %s55, %s56
      %p65 = scmp.eq.s32.totalorder %s24, 0
      %p66 = por %p64, %p65
      %p67 = scmp.ne.s32.totalorder %s55, %s56
      %p68 = scmp.eq.s32.totalorder %s25, 1
      %p69 = por %p67, %p68
      %p71 = scmp.ne.s32.totalorder %s56, %s70
      %p72 = scmp.eq.s32.totalorder %s25, 0
      %p73 = por %p71, %p72
      %s75 = sadd.s32 %s74, 1
      %p78 = scmp.eq.s32.totalorder %s19, 1
      %p79 = scmp.ne.s32.totalorder %s74, %s76
      %p80 = scmp.eq.s32.totalorder %s19, 0
      %p81 = por %p79, %p80
      %p82 = scmp.ne.s32.totalorder %s74, %s76
      %p83 = scmp.eq.s32.totalorder %s24, 1
      %p84 = por %p82, %p83
      %p85 = scmp.ne.s32.totalorder %s76, %s77
      %p86 = scmp.eq.s32.totalorder %s24, 0
      %p87 = por %p85, %p86
      %p88 = scmp.ne.s32.totalorder %s76, %s77
      %p89 = scmp.eq.s32.totalorder %s25, 1
      %p90 = por %p88, %p89
      %p92 = scmp.ne.s32.totalorder %s77, %s91
      %p93 = scmp.eq.s32.totalorder %s25, 0
      %p94 = por %p92, %p93
      %s96 = sadd.s32 %s95, 1
      %p99 = scmp.eq.s32.totalorder %s19, 1
      %p100 = scmp.ne.s32.totalorder %s95, %s97
      %p101 = scmp.eq.s32.totalorder %s19, 0
      %p102 = por %p100, %p101
      %p103 = scmp.ne.s32.totalorder %s95, %s97
      %p104 = scmp.eq.s32.totalorder %s24, 1
      %p105 = por %p103, %p104
      %p106 = scmp.ne.s32.totalorder %s97, %s98
      %p107 = scmp.eq.s32.totalorder %s24, 0
      %p108 = por %p106, %p107
      %p109 = scmp.ne.s32.totalorder %s97, %s98
      %p110 = scmp.eq.s32.totalorder %s25, 1
      %p111 = por %p109, %p110
      %p113 = scmp.ne.s32.totalorder %s98, %s112
      %p114 = scmp.eq.s32.totalorder %s25, 0
      %p115 = por %p113, %p114
      %s117 = sadd.s32 %s116, 1
      %p120 = scmp.eq.s32.totalorder %s19, 1
      %p121 = scmp.ne.s32.totalorder %s116, %s118
      %p122 = scmp.eq.s32.totalorder %s19, 0
      %p123 = por %p121, %p122
      %p124 = scmp.ne.s32.totalorder %s116, %s118
      %p125 = scmp.eq.s32.totalorder %s24, 1
      %p126 = por %p124, %p125
      %p127 = scmp.ne.s32.totalorder %s118, %s119
      %p128 = scmp.eq.s32.totalorder %s24, 0
      %p129 = por %p127, %p128
      %p130 = scmp.ne.s32.totalorder %s118, %s119
      %p131 = scmp.eq.s32.totalorder %s25, 1
      %p132 = por %p130, %p131
      %p134 = scmp.ne.s32.totalorder %s119, %s133
      %p135 = scmp.eq.s32.totalorder %s25, 0
      %p136 = por %p134, %p135
      %s137 = ssub.s32 %s19, %s26
      %p138 = scmp.eq.s32.totalorder %s137, 0
      %s140 = sadd.s32 %s139, 1
      %s141 = scalar_select %p138, %s139, %s140
      %p144 = pneg %p138
      %p145 = scmp.eq.s32.totalorder %s19, 1
      %p146 = por %p144, %p145
      %p147 = scmp.ne.s32.totalorder %s139, %s142
      %p148 = scmp.eq.s32.totalorder %s19, 0
      %p149 = por %p147, %p148
      %p150 = scmp.ne.s32.totalorder %s139, %s142
      %p151 = scmp.eq.s32.totalorder %s24, 1
      %p152 = por %p150, %p151
      %p153 = scmp.ne.s32.totalorder %s142, %s143
      %p154 = scmp.eq.s32.totalorder %s24, 0
      %p155 = por %p153, %p154
      %p156 = scmp.ne.s32.totalorder %s142, %s143
      %p157 = scmp.eq.s32.totalorder %s25, 1
      %p158 = por %p156, %p157
      %p160 = scmp.ne.s32.totalorder %s143, %s159
      %p161 = scmp.eq.s32.totalorder %s25, 0
      %p162 = por %p160, %p161
      %p163 = scmp.le.s32.totalorder 1, %s19
      %p164 = scmp.lt.s32.totalorder %s19, 3
      %p165 = pnand %p163, %p164
      %p166 = pneg %p165
      // Predicated region
      $region9: #{tpu_custom_call.1} parent=5 // pred_check
        _
      $region10: #{tpu_custom_call.1} parent=5 // pred_check_branch
        %168 = sbr.rel (%p165) target = $region12
      $region11: #{tpu_custom_call.1} parent=5 // pred_region
        %s169 = ssub.s32 %s19, 1
        // Predicated region
        $region13: #{tpu_custom_call.1} parent=11 // pred_check
          %p170 = pneg %p66
        $region14: #{tpu_custom_call.1} parent=11 // pred_check_branch
          %172 = sbr.rel (%p170) target = $region16
        $region15: #{tpu_custom_call.1} parent=11 // pred_region
          %174 = vsyncadd [#allocation6], 0
          %s175 = sshll.u32 %s1, 4
          %s176 = int_to_ptr.hbm [resolvable:$true] %s175
          %s177 = sshll.u32 [#allocation5], 4
          %s178 = int_to_ptr.vmem [resolvable:$true] %s177
          %183 = dma.hbm_to_vmem [thread:$0]  %s176, 4096, %s178, [#allocation6], 128, 128, 8
        $region16: #{tpu_custom_call.1} parent=11 // pred_fallthru
          _
        // Predicated region
        $region17: #{tpu_custom_call.1} parent=11 // pred_check
          %p184 = pneg %p87
        $region18: #{tpu_custom_call.1} parent=11 // pred_check_branch
          %186 = sbr.rel (%p184) target = $region20
        $region19: #{tpu_custom_call.1} parent=11 // pred_region
          %188 = vsyncadd [#allocation6], 0
          %s190 = sshll.u32 %s2, 4
          %s191 = int_to_ptr.hbm [resolvable:$true] %s190
          %s192 = sshll.u32 [#allocation7], 4
          %s193 = int_to_ptr.vmem [resolvable:$true] %s192
          %195 = dma.hbm_to_vmem [thread:$0]  %s191, 32, %s193, [#allocation6]
        $region20: #{tpu_custom_call.1} parent=11 // pred_fallthru
          _
        // Predicated region
        $region21: #{tpu_custom_call.1} parent=11 // pred_check
          %p196 = pneg %p108
        $region22: #{tpu_custom_call.1} parent=11 // pred_check_branch
          %198 = sbr.rel (%p196) target = $region24
        $region23: #{tpu_custom_call.1} parent=11 // pred_region
          %200 = vsyncadd [#allocation9], 0
          %s201 = sshll.u32 %s3, 4
          %s202 = int_to_ptr.hbm [resolvable:$true] %s201
          %s203 = sshll.u32 [#allocation8], 4
          %s204 = int_to_ptr.vmem [resolvable:$true] %s203
          %209 = dma.hbm_to_vmem [thread:$0]  %s202, 2048, %s204, [#allocation9], 128, 128, 8
        $region24: #{tpu_custom_call.1} parent=11 // pred_fallthru
          _
        // Predicated region
        $region25: #{tpu_custom_call.1} parent=11 // pred_check
          %p210 = pneg %p129
        $region26: #{tpu_custom_call.1} parent=11 // pred_check_branch
          %212 = sbr.rel (%p210) target = $region28
        $region27: #{tpu_custom_call.1} parent=11 // pred_region
          _
        $region28: #{tpu_custom_call.1} parent=11 // pred_fallthru
          _
      $region12: #{tpu_custom_call.1} parent=5 // pred_fallthru
        _
      %p213 = scmp.lt.s32.totalorder %s19, 2
      // Predicated region
      $region29: #{tpu_custom_call.1} parent=5 // pred_check
        %p214 = pneg %p213
      $region30: #{tpu_custom_call.1} parent=5 // pred_check_branch
        %216 = sbr.rel (%p214) target = $region32
      $region31: #{tpu_custom_call.1} parent=5 // pred_region
        // Predicated region
        $region33: #{tpu_custom_call.1} parent=31 // pred_check
          %p217 = pneg %p39
        $region34: #{tpu_custom_call.1} parent=31 // pred_check_branch
          %219 = sbr.rel (%p217) target = $region36
        $region35: #{tpu_custom_call.1} parent=31 // pred_region
          %s220 = sand.u32 %s29, 1
          %s221 = scalar_lea.sflag [#allocation3], %s220
          %s222 = sand.u32 %s29, 1
          %s223 = smul.addr %s222, 256
          %s224 = scalar_lea.vmem [#allocation2], %s223
          %s225 = smul.u32 32, %s19
          %227 = vsyncadd %s221, 0
          %s228 = smul.addr %s225, 8
          %s229 = scalar_lea.hbm %s0, %s228
          %s230 = sshll.u32 %s229, 4
          %s231 = int_to_ptr.hbm [resolvable:$true] %s230
          %s232 = sshll.u32 %s224, 4
          %s233 = int_to_ptr.vmem [resolvable:$true] %s232
          %238 = dma.hbm_to_vmem [thread:$0]  %s231, 4096, %s233, %s221, 128, 128, 8
        $region36: #{tpu_custom_call.1} parent=31 // pred_fallthru
          _
      $region32: #{tpu_custom_call.1} parent=5 // pred_fallthru
        _
      %p239 = scmp.le.s32.totalorder 1, %s19
      %p240 = scmp.lt.s32.totalorder %s19, 3
      %p241 = pnand %p239, %p240
      %p242 = pneg %p241
      // Predicated region
      $region37: #{tpu_custom_call.1} parent=5 // pred_check
        _
      $region38: #{tpu_custom_call.1} parent=5 // pred_check_branch
        %244 = sbr.rel (%p241) target = $region40
      $region39: #{tpu_custom_call.1} parent=5 // pred_region
        %s245 = ssub.s32 %s19, 1
        %s246 = sand.u32 %s32, 1
        %s247 = scalar_lea.sflag [#allocation3], %s246
        %s248 = sand.u32 %s32, 1
        %s249 = smul.addr %s248, 256
        %s250 = scalar_lea.vmem [#allocation2], %s249
        // Predicated region
        $region41: #{tpu_custom_call.1} parent=39 // pred_check
          %p251 = pneg %p45
        $region42: #{tpu_custom_call.1} parent=39 // pred_check_branch
          %253 = sbr.rel (%p251) target = $region44
        $region43: #{tpu_custom_call.1} parent=39 // pred_region
          %255 = dma.done %s247, 4096
        $region44: #{tpu_custom_call.1} parent=39 // pred_fallthru
          _
        // Predicated region
        $region45: #{tpu_custom_call.1} parent=39 // pred_check
          %p256 = pneg %p66
        $region46: #{tpu_custom_call.1} parent=39 // pred_check_branch
          %258 = sbr.rel (%p256) target = $region48
        $region47: #{tpu_custom_call.1} parent=39 // pred_region
          %260 = dma.done [#allocation6], 4096
        $region48: #{tpu_custom_call.1} parent=39 // pred_fallthru
          _
        // Predicated region
        $region49: #{tpu_custom_call.1} parent=39 // pred_check
          %p261 = pneg %p87
        $region50: #{tpu_custom_call.1} parent=39 // pred_check_branch
          %263 = sbr.rel (%p261) target = $region52
        $region51: #{tpu_custom_call.1} parent=39 // pred_region
          %265 = dma.done [#allocation6], 32
        $region52: #{tpu_custom_call.1} parent=39 // pred_fallthru
          _
        // Predicated region
        $region53: #{tpu_custom_call.1} parent=39 // pred_check
          %p266 = pneg %p108
        $region54: #{tpu_custom_call.1} parent=39 // pred_check_branch
          %268 = sbr.rel (%p266) target = $region56
        $region55: #{tpu_custom_call.1} parent=39 // pred_region
          %270 = dma.done [#allocation9], 2048
        $region56: #{tpu_custom_call.1} parent=39 // pred_fallthru
          _
        %s271 = sand.u32 %s32, 1
        %s272 = scalar_lea.sflag [#allocation3], %s271
        %s273 = sand.u32 %s32, 1
        %s274 = smul.addr %s273, 256
        %s275 = scalar_lea.vmem [#allocation2], %s274
        %p276 = pneg %p45
        %p277 = pneg %p42
        %p278 = pneg %p66
        %p279 = pneg %p63
        %p280 = pneg %p87
        %p281 = pneg %p84
        %p282 = pneg %p108
        %p283 = pneg %p105
        %p284 = pneg %p129
        %p285 = pneg %p126
        %p286 = pneg %p155
        %p287 = pneg %p152
        %s288 = sand.u32 %s142, 1
        %s289 = scalar_lea.sflag [#allocation4], %s288
        %s290 = sand.u32 %s142, 1
        %s291 = smul.addr %s290, 256
        %s292 = scalar_lea.vmem [#allocation10], %s291
        %s293 = smul.u32 32, %s24
        %s294 = smul.u32 32, %s24
        %v295 = vld [vmem:[%s250] sm:$0xff]
        %v296 = vld [vmem:[%s250 + $0x8] sm:$0xff]
        %v297 = vld [vmem:[%s250 + $0x10] sm:$0xff]
        %v298 = vld [vmem:[%s250 + $0x18] sm:$0xff]
        %v299 = vld [vmem:[%s250 + $0x20] sm:$0xff]
        %v300 = vld [vmem:[%s250 + $0x28] sm:$0xff]
        %v301 = vld [vmem:[%s250 + $0x30] sm:$0xff]
        %v302 = vld [vmem:[%s250 + $0x38] sm:$0xff]
        %v303 = vld [vmem:[%s250 + $0x40] sm:$0xff]
        %v304 = vld [vmem:[%s250 + $0x48] sm:$0xff]
        %v305 = vld [vmem:[%s250 + $0x50] sm:$0xff]
        %v306 = vld [vmem:[%s250 + $0x58] sm:$0xff]
        %v307 = vld [vmem:[%s250 + $0x60] sm:$0xff]
        %v308 = vld [vmem:[%s250 + $0x68] sm:$0xff]
        %v309 = vld [vmem:[%s250 + $0x70] sm:$0xff]
        %v310 = vld [vmem:[%s250 + $0x78] sm:$0xff]
        %v311 = vld [vmem:[%s250 + $0x80] sm:$0xff]
        %v312 = vld [vmem:[%s250 + $0x88] sm:$0xff]
        %v313 = vld [vmem:[%s250 + $0x90] sm:$0xff]
        %v314 = vld [vmem:[%s250 + $0x98] sm:$0xff]
        %v315 = vld [vmem:[%s250 + $0xa0] sm:$0xff]
        %v316 = vld [vmem:[%s250 + $0xa8] sm:$0xff]
        %v317 = vld [vmem:[%s250 + $0xb0] sm:$0xff]
        %v318 = vld [vmem:[%s250 + $0xb8] sm:$0xff]
        %v319 = vld [vmem:[%s250 + $0xc0] sm:$0xff]
        %v320 = vld [vmem:[%s250 + $0xc8] sm:$0xff]
        %v321 = vld [vmem:[%s250 + $0xd0] sm:$0xff]
        %v322 = vld [vmem:[%s250 + $0xd8] sm:$0xff]
        %v323 = vld [vmem:[%s250 + $0xe0] sm:$0xff]
        %v324 = vld [vmem:[%s250 + $0xe8] sm:$0xff]
        %v325 = vld [vmem:[%s250 + $0xf0] sm:$0xff]
        %v326 = vld [vmem:[%s250 + $0xf8] sm:$0xff]
        %v327 = vld [vmem:[#allocation5] sm:$0xff]
        %v328 = vld [vmem:[#allocation5 + $0x8] sm:$0xff]
        %v329 = vld [vmem:[#allocation5 + $0x10] sm:$0xff]
        %v330 = vld [vmem:[#allocation5 + $0x18] sm:$0xff]
        %v331 = vld [vmem:[#allocation5 + $0x20] sm:$0xff]
        %v332 = vld [vmem:[#allocation5 + $0x28] sm:$0xff]
        %v333 = vld [vmem:[#allocation5 + $0x30] sm:$0xff]
        %v334 = vld [vmem:[#allocation5 + $0x38] sm:$0xff]
        %v335 = vld [vmem:[#allocation5 + $0x40] sm:$0xff]
        %v336 = vld [vmem:[#allocation5 + $0x48] sm:$0xff]
        %v337 = vld [vmem:[#allocation5 + $0x50] sm:$0xff]
        %v338 = vld [vmem:[#allocation5 + $0x58] sm:$0xff]
        %v339 = vld [vmem:[#allocation5 + $0x60] sm:$0xff]
        %v340 = vld [vmem:[#allocation5 + $0x68] sm:$0xff]
        %v341 = vld [vmem:[#allocation5 + $0x70] sm:$0xff]
        %v342 = vld [vmem:[#allocation5 + $0x78] sm:$0xff]
        %v343 = vld [vmem:[#allocation7] sm:$0x1]
        %v344 = vperm.slane %v343, 0
        %345 = vmatpush.msra.mxu0 %v342
        %346 = vmatpush.msra.mxu0 %v341
        %347 = vmatpush.msra.mxu0 %v340
        %348 = vmatpush.msra.mxu0 %v339
        %349 = vmatpush.msra.mxu0 %v338
        %350 = vmatpush.msra.mxu0 %v337
        %351 = vmatpush.msra.mxu0 %v336
        %352 = vmatpush.msra.mxu0 %v335
        %353 = vmatpush.msra.mxu0 %v334
        %354 = vmatpush.msra.mxu0 %v333
        %355 = vmatpush.msra.mxu0 %v332
        %356 = vmatpush.msra.mxu0 %v331
        %357 = vmatpush.msra.mxu0 %v330
        %358 = vmatpush.msra.mxu0 %v329
        %359 = vmatpush.msra.mxu0 %v328
        %360 = vmatpush.msra.mxu0 %v327
        %361 = vmatmul.f32.gmra.mxu0 %v295
        %v362 = vpop.f32.mrf.mxu0
        %v363 = vadd.f32 %v344, %v362
        %364 = vmatmul.f32.gmra.mxu0 %v296
        %v365 = vpop.f32.mrf.mxu0
        %v366 = vadd.f32 %v344, %v365
        %367 = vmatmul.f32.gmra.mxu0 %v297
        %v368 = vpop.f32.mrf.mxu0
        %v369 = vadd.f32 %v344, %v368
        %370 = vmatmul.f32.gmra.mxu0 %v298
        %v371 = vpop.f32.mrf.mxu0
        %v372 = vadd.f32 %v344, %v371
        %373 = vmatmul.f32.gmra.mxu0 %v299
        %v374 = vpop.f32.mrf.mxu0
        %v375 = vadd.f32 %v344, %v374
        %376 = vmatmul.f32.gmra.mxu0 %v300
        %v377 = vpop.f32.mrf.mxu0
        %v378 = vadd.f32 %v344, %v377
        %379 = vmatmul.f32.gmra.mxu0 %v301
        %v380 = vpop.f32.mrf.mxu0
        %v381 = vadd.f32 %v344, %v380
        %382 = vmatmul.f32.gmra.mxu0 %v302
        %v383 = vpop.f32.mrf.mxu0
        %v384 = vadd.f32 %v344, %v383
        %385 = vmatmul.f32.gmra.mxu0 %v303
        %v386 = vpop.f32.mrf.mxu0
        %v387 = vadd.f32 %v344, %v386
        %388 = vmatmul.f32.gmra.mxu0 %v304
        %v389 = vpop.f32.mrf.mxu0
        %v390 = vadd.f32 %v344, %v389
        %391 = vmatmul.f32.gmra.mxu0 %v305
        %v392 = vpop.f32.mrf.mxu0
        %v393 = vadd.f32 %v344, %v392
        %394 = vmatmul.f32.gmra.mxu0 %v306
        %v395 = vpop.f32.mrf.mxu0
        %v396 = vadd.f32 %v344, %v395
        %397 = vmatmul.f32.gmra.mxu0 %v307
        %v398 = vpop.f32.mrf.mxu0
        %v399 = vadd.f32 %v344, %v398
        %400 = vmatmul.f32.gmra.mxu0 %v308
        %v401 = vpop.f32.mrf.mxu0
        %v402 = vadd.f32 %v344, %v401
        %403 = vmatmul.f32.gmra.mxu0 %v309
        %v404 = vpop.f32.mrf.mxu0
        %v405 = vadd.f32 %v344, %v404
        %406 = vmatmul.f32.gmra.mxu0 %v310
        %v407 = vpop.f32.mrf.mxu0
        %v408 = vadd.f32 %v344, %v407
        %409 = vmatmul.f32.gmra.mxu0 %v311
        %v410 = vpop.f32.mrf.mxu0
        %v411 = vadd.f32 %v344, %v410
        %412 = vmatmul.f32.gmra.mxu0 %v312
        %v413 = vpop.f32.mrf.mxu0
        %v414 = vadd.f32 %v344, %v413
        %415 = vmatmul.f32.gmra.mxu0 %v313
        %v416 = vpop.f32.mrf.mxu0
        %v417 = vadd.f32 %v344, %v416
        %418 = vmatmul.f32.gmra.mxu0 %v314
        %v419 = vpop.f32.mrf.mxu0
        %v420 = vadd.f32 %v344, %v419
        %421 = vmatmul.f32.gmra.mxu0 %v315
        %v422 = vpop.f32.mrf.mxu0
        %v423 = vadd.f32 %v344, %v422
        %424 = vmatmul.f32.gmra.mxu0 %v316
        %v425 = vpop.f32.mrf.mxu0
        %v426 = vadd.f32 %v344, %v425
        %427 = vmatmul.f32.gmra.mxu0 %v317
        %v428 = vpop.f32.mrf.mxu0
        %v429 = vadd.f32 %v344, %v428
        %430 = vmatmul.f32.gmra.mxu0 %v318
        %v431 = vpop.f32.mrf.mxu0
        %v432 = vadd.f32 %v344, %v431
        %433 = vmatmul.f32.gmra.mxu0 %v319
        %v434 = vpop.f32.mrf.mxu0
        %v435 = vadd.f32 %v344, %v434
        %436 = vmatmul.f32.gmra.mxu0 %v320
        %v437 = vpop.f32.mrf.mxu0
        %v438 = vadd.f32 %v344, %v437
        %439 = vmatmul.f32.gmra.mxu0 %v321
        %v440 = vpop.f32.mrf.mxu0
        %v441 = vadd.f32 %v344, %v440
        %442 = vmatmul.f32.gmra.mxu0 %v322
        %v443 = vpop.f32.mrf.mxu0
        %v444 = vadd.f32 %v344, %v443
        %445 = vmatmul.f32.gmra.mxu0 %v323
        %v446 = vpop.f32.mrf.mxu0
        %v447 = vadd.f32 %v344, %v446
        %448 = vmatmul.f32.gmra.mxu0 %v324
        %v449 = vpop.f32.mrf.mxu0
        %v450 = vadd.f32 %v344, %v449
        %451 = vmatmul.f32.gmra.mxu0 %v325
        %v452 = vpop.f32.mrf.mxu0
        %v453 = vadd.f32 %v344, %v452
        %454 = vmatmul.f32.gmra.mxu0 %v326
        %v455 = vpop.f32.mrf.mxu0
        %v456 = vadd.f32 %v344, %v455
        %457 = vdwg.mxu0
        %v458 = vmul.f32 %v363, 0.2
        %v459 = vmul.f32 %v366, 0.2
        %v460 = vmul.f32 %v369, 0.2
        %v461 = vmul.f32 %v372, 0.2
        %v462 = vmul.f32 %v375, 0.2
        %v463 = vmul.f32 %v378, 0.2
        %v464 = vmul.f32 %v381, 0.2
        %v465 = vmul.f32 %v384, 0.2
        %v466 = vmul.f32 %v387, 0.2
        %v467 = vmul.f32 %v390, 0.2
        %v468 = vmul.f32 %v393, 0.2
        %v469 = vmul.f32 %v396, 0.2
        %v470 = vmul.f32 %v399, 0.2
        %v471 = vmul.f32 %v402, 0.2
        %v472 = vmul.f32 %v405, 0.2
        %v473 = vmul.f32 %v408, 0.2
        %v474 = vmul.f32 %v411, 0.2
        %v475 = vmul.f32 %v414, 0.2
        %v476 = vmul.f32 %v417, 0.2
        %v477 = vmul.f32 %v420, 0.2
        %v478 = vmul.f32 %v423, 0.2
        %v479 = vmul.f32 %v426, 0.2
        %v480 = vmul.f32 %v429, 0.2
        %v481 = vmul.f32 %v432, 0.2
        %v482 = vmul.f32 %v435, 0.2
        %v483 = vmul.f32 %v438, 0.2
        %v484 = vmul.f32 %v441, 0.2
        %v485 = vmul.f32 %v444, 0.2
        %v486 = vmul.f32 %v447, 0.2
        %v487 = vmul.f32 %v450, 0.2
        %v488 = vmul.f32 %v453, 0.2
        %v489 = vmul.f32 %v456, 0.2
        %v490 = vmax.f32 %v363, %v458
        %v491 = vmax.f32 %v366, %v459
        %v492 = vmax.f32 %v369, %v460
        %v493 = vmax.f32 %v372, %v461
        %v494 = vmax.f32 %v375, %v462
        %v495 = vmax.f32 %v378, %v463
        %v496 = vmax.f32 %v381, %v464
        %v497 = vmax.f32 %v384, %v465
        %v498 = vmax.f32 %v387, %v466
        %v499 = vmax.f32 %v390, %v467
        %v500 = vmax.f32 %v393, %v468
        %v501 = vmax.f32 %v396, %v469
        %v502 = vmax.f32 %v399, %v470
        %v503 = vmax.f32 %v402, %v471
        %v504 = vmax.f32 %v405, %v472
        %v505 = vmax.f32 %v408, %v473
        %v506 = vmax.f32 %v411, %v474
        %v507 = vmax.f32 %v414, %v475
        %v508 = vmax.f32 %v417, %v476
        %v509 = vmax.f32 %v420, %v477
        %v510 = vmax.f32 %v423, %v478
        %v511 = vmax.f32 %v426, %v479
        %v512 = vmax.f32 %v429, %v480
        %v513 = vmax.f32 %v432, %v481
        %v514 = vmax.f32 %v435, %v482
        %v515 = vmax.f32 %v438, %v483
        %v516 = vmax.f32 %v441, %v484
        %v517 = vmax.f32 %v444, %v485
        %v518 = vmax.f32 %v447, %v486
        %v519 = vmax.f32 %v450, %v487
        %v520 = vmax.f32 %v453, %v488
        %v521 = vmax.f32 %v456, %v489
        %v522 = vld [vmem:[#allocation5 + $0x80] sm:$0xff]
        %v523 = vld [vmem:[#allocation5 + $0x88] sm:$0xff]
        %v524 = vld [vmem:[#allocation5 + $0x90] sm:$0xff]
        %v525 = vld [vmem:[#allocation5 + $0x98] sm:$0xff]
        %v526 = vld [vmem:[#allocation5 + $0xa0] sm:$0xff]
        %v527 = vld [vmem:[#allocation5 + $0xa8] sm:$0xff]
        %v528 = vld [vmem:[#allocation5 + $0xb0] sm:$0xff]
        %v529 = vld [vmem:[#allocation5 + $0xb8] sm:$0xff]
        %v530 = vld [vmem:[#allocation5 + $0xc0] sm:$0xff]
        %v531 = vld [vmem:[#allocation5 + $0xc8] sm:$0xff]
        %v532 = vld [vmem:[#allocation5 + $0xd0] sm:$0xff]
        %v533 = vld [vmem:[#allocation5 + $0xd8] sm:$0xff]
        %v534 = vld [vmem:[#allocation5 + $0xe0] sm:$0xff]
        %v535 = vld [vmem:[#allocation5 + $0xe8] sm:$0xff]
        %v536 = vld [vmem:[#allocation5 + $0xf0] sm:$0xff]
        %v537 = vld [vmem:[#allocation5 + $0xf8] sm:$0xff]
        %v538 = vld [vmem:[#allocation7 + $0x1] sm:$0x1]
        %v539 = vperm.slane %v538, 0
        %540 = vmatpush.msra.mxu0 %v537
        %541 = vmatpush.msra.mxu0 %v536
        %542 = vmatpush.msra.mxu0 %v535
        %543 = vmatpush.msra.mxu0 %v534
        %544 = vmatpush.msra.mxu0 %v533
        %545 = vmatpush.msra.mxu0 %v532
        %546 = vmatpush.msra.mxu0 %v531
        %547 = vmatpush.msra.mxu0 %v530
        %548 = vmatpush.msra.mxu0 %v529
        %549 = vmatpush.msra.mxu0 %v528
        %550 = vmatpush.msra.mxu0 %v527
        %551 = vmatpush.msra.mxu0 %v526
        %552 = vmatpush.msra.mxu0 %v525
        %553 = vmatpush.msra.mxu0 %v524
        %554 = vmatpush.msra.mxu0 %v523
        %555 = vmatpush.msra.mxu0 %v522
        %556 = vmatmul.f32.gmra.mxu0 %v490
        %v557 = vpop.f32.mrf.mxu0
        %v558 = vadd.f32 %v539, %v557
        %559 = vmatmul.f32.gmra.mxu0 %v491
        %v560 = vpop.f32.mrf.mxu0
        %v561 = vadd.f32 %v539, %v560
        %562 = vmatmul.f32.gmra.mxu0 %v492
        %v563 = vpop.f32.mrf.mxu0
        %v564 = vadd.f32 %v539, %v563
        %565 = vmatmul.f32.gmra.mxu0 %v493
        %v566 = vpop.f32.mrf.mxu0
        %v567 = vadd.f32 %v539, %v566
        %568 = vmatmul.f32.gmra.mxu0 %v494
        %v569 = vpop.f32.mrf.mxu0
        %v570 = vadd.f32 %v539, %v569
        %571 = vmatmul.f32.gmra.mxu0 %v495
        %v572 = vpop.f32.mrf.mxu0
        %v573 = vadd.f32 %v539, %v572
        %574 = vmatmul.f32.gmra.mxu0 %v496
        %v575 = vpop.f32.mrf.mxu0
        %v576 = vadd.f32 %v539, %v575
        %577 = vmatmul.f32.gmra.mxu0 %v497
        %v578 = vpop.f32.mrf.mxu0
        %v579 = vadd.f32 %v539, %v578
        %580 = vmatmul.f32.gmra.mxu0 %v498
        %v581 = vpop.f32.mrf.mxu0
        %v582 = vadd.f32 %v539, %v581
        %583 = vmatmul.f32.gmra.mxu0 %v499
        %v584 = vpop.f32.mrf.mxu0
        %v585 = vadd.f32 %v539, %v584
        %586 = vmatmul.f32.gmra.mxu0 %v500
        %v587 = vpop.f32.mrf.mxu0
        %v588 = vadd.f32 %v539, %v587
        %589 = vmatmul.f32.gmra.mxu0 %v501
        %v590 = vpop.f32.mrf.mxu0
        %v591 = vadd.f32 %v539, %v590
        %592 = vmatmul.f32.gmra.mxu0 %v502
        %v593 = vpop.f32.mrf.mxu0
        %v594 = vadd.f32 %v539, %v593
        %595 = vmatmul.f32.gmra.mxu0 %v503
        %v596 = vpop.f32.mrf.mxu0
        %v597 = vadd.f32 %v539, %v596
        %598 = vmatmul.f32.gmra.mxu0 %v504
        %v599 = vpop.f32.mrf.mxu0
        %v600 = vadd.f32 %v539, %v599
        %601 = vmatmul.f32.gmra.mxu0 %v505
        %v602 = vpop.f32.mrf.mxu0
        %v603 = vadd.f32 %v539, %v602
        %604 = vmatmul.f32.gmra.mxu0 %v506
        %v605 = vpop.f32.mrf.mxu0
        %v606 = vadd.f32 %v539, %v605
        %607 = vmatmul.f32.gmra.mxu0 %v507
        %v608 = vpop.f32.mrf.mxu0
        %v609 = vadd.f32 %v539, %v608
        %610 = vmatmul.f32.gmra.mxu0 %v508
        %v611 = vpop.f32.mrf.mxu0
        %v612 = vadd.f32 %v539, %v611
        %613 = vmatmul.f32.gmra.mxu0 %v509
        %v614 = vpop.f32.mrf.mxu0
        %v615 = vadd.f32 %v539, %v614
        %616 = vmatmul.f32.gmra.mxu0 %v510
        %v617 = vpop.f32.mrf.mxu0
        %v618 = vadd.f32 %v539, %v617
        %619 = vmatmul.f32.gmra.mxu0 %v511
        %v620 = vpop.f32.mrf.mxu0
        %v621 = vadd.f32 %v539, %v620
        %622 = vmatmul.f32.gmra.mxu0 %v512
        %v623 = vpop.f32.mrf.mxu0
        %v624 = vadd.f32 %v539, %v623
        %625 = vmatmul.f32.gmra.mxu0 %v513
        %v626 = vpop.f32.mrf.mxu0
        %v627 = vadd.f32 %v539, %v626
        %628 = vmatmul.f32.gmra.mxu0 %v514
        %v629 = vpop.f32.mrf.mxu0
        %v630 = vadd.f32 %v539, %v629
        %631 = vmatmul.f32.gmra.mxu0 %v515
        %v632 = vpop.f32.mrf.mxu0
        %v633 = vadd.f32 %v539, %v632
        %634 = vmatmul.f32.gmra.mxu0 %v516
        %v635 = vpop.f32.mrf.mxu0
        %v636 = vadd.f32 %v539, %v635
        %637 = vmatmul.f32.gmra.mxu0 %v517
        %v638 = vpop.f32.mrf.mxu0
        %v639 = vadd.f32 %v539, %v638
        %640 = vmatmul.f32.gmra.mxu0 %v518
        %v641 = vpop.f32.mrf.mxu0
        %v642 = vadd.f32 %v539, %v641
        %643 = vmatmul.f32.gmra.mxu0 %v519
        %v644 = vpop.f32.mrf.mxu0
        %v645 = vadd.f32 %v539, %v644
        %646 = vmatmul.f32.gmra.mxu0 %v520
        %v647 = vpop.f32.mrf.mxu0
        %v648 = vadd.f32 %v539, %v647
        %649 = vmatmul.f32.gmra.mxu0 %v521
        %v650 = vpop.f32.mrf.mxu0
        %v651 = vadd.f32 %v539, %v650
        %652 = vdwg.mxu0
        %v653 = vmax.f32 %v558, 0.0
        %v654 = vmax.f32 %v561, 0.0
        %v655 = vmax.f32 %v564, 0.0
        %v656 = vmax.f32 %v567, 0.0
        %v657 = vmax.f32 %v570, 0.0
        %v658 = vmax.f32 %v573, 0.0
        %v659 = vmax.f32 %v576, 0.0
        %v660 = vmax.f32 %v579, 0.0
        %v661 = vmax.f32 %v582, 0.0
        %v662 = vmax.f32 %v585, 0.0
        %v663 = vmax.f32 %v588, 0.0
        %v664 = vmax.f32 %v591, 0.0
        %v665 = vmax.f32 %v594, 0.0
        %v666 = vmax.f32 %v597, 0.0
        %v667 = vmax.f32 %v600, 0.0
        %v668 = vmax.f32 %v603, 0.0
        %v669 = vmax.f32 %v606, 0.0
        %v670 = vmax.f32 %v609, 0.0
        %v671 = vmax.f32 %v612, 0.0
        %v672 = vmax.f32 %v615, 0.0
        %v673 = vmax.f32 %v618, 0.0
        %v674 = vmax.f32 %v621, 0.0
        %v675 = vmax.f32 %v624, 0.0
        %v676 = vmax.f32 %v627, 0.0
        %v677 = vmax.f32 %v630, 0.0
        %v678 = vmax.f32 %v633, 0.0
        %v679 = vmax.f32 %v636, 0.0
        %v680 = vmax.f32 %v639, 0.0
        %v681 = vmax.f32 %v642, 0.0
        %v682 = vmax.f32 %v645, 0.0
        %v683 = vmax.f32 %v648, 0.0
        %v684 = vmax.f32 %v651, 0.0
        %v685 = vld [vmem:[#allocation8] sm:$0xff]
        %v686 = vld [vmem:[#allocation8 + $0x8] sm:$0xff]
        %v687 = vld [vmem:[#allocation8 + $0x10] sm:$0xff]
        %v688 = vld [vmem:[#allocation8 + $0x18] sm:$0xff]
        %v689 = vld [vmem:[#allocation8 + $0x20] sm:$0xff]
        %v690 = vld [vmem:[#allocation8 + $0x28] sm:$0xff]
        %v691 = vld [vmem:[#allocation8 + $0x30] sm:$0xff]
        %v692 = vld [vmem:[#allocation8 + $0x38] sm:$0xff]
        %v693 = vld [vmem:[#allocation8 + $0x40] sm:$0xff]
        %v694 = vld [vmem:[#allocation8 + $0x48] sm:$0xff]
        %v695 = vld [vmem:[#allocation8 + $0x50] sm:$0xff]
        %v696 = vld [vmem:[#allocation8 + $0x58] sm:$0xff]
        %v697 = vld [vmem:[#allocation8 + $0x60] sm:$0xff]
        %v698 = vld [vmem:[#allocation8 + $0x68] sm:$0xff]
        %v699 = vld [vmem:[#allocation8 + $0x70] sm:$0xff]
        %v700 = vld [vmem:[#allocation8 + $0x78] sm:$0xff]
        %v701 = vld [vmem:[%s4] sm:$0x1]
        %v703 = vperm.slane %v701, 0
        %705 = vmatpush.msra.mxu0 %v700
        %706 = vmatpush.msra.mxu0 %v699
        %707 = vmatpush.msra.mxu0 %v698
        %708 = vmatpush.msra.mxu0 %v697
        %709 = vmatpush.msra.mxu0 %v696
        %710 = vmatpush.msra.mxu0 %v695
        %711 = vmatpush.msra.mxu0 %v694
        %712 = vmatpush.msra.mxu0 %v693
        %713 = vmatpush.msra.mxu0 %v692
        %714 = vmatpush.msra.mxu0 %v691
        %715 = vmatpush.msra.mxu0 %v690
        %716 = vmatpush.msra.mxu0 %v689
        %717 = vmatpush.msra.mxu0 %v688
        %718 = vmatpush.msra.mxu0 %v687
        %719 = vmatpush.msra.mxu0 %v686
        %720 = vmatpush.msra.mxu0 %v685
        %721 = vmatmul.f32.gmra.mxu0 %v653
        %v722 = vpop.f32.mrf.mxu0
        %v723 = vadd.f32 %v703, %v722
        %724 = vmatmul.f32.gmra.mxu0 %v654
        %v725 = vpop.f32.mrf.mxu0
        %v726 = vadd.f32 %v703, %v725
        %727 = vmatmul.f32.gmra.mxu0 %v655
        %v728 = vpop.f32.mrf.mxu0
        %v729 = vadd.f32 %v703, %v728
        %730 = vmatmul.f32.gmra.mxu0 %v656
        %v731 = vpop.f32.mrf.mxu0
        %v732 = vadd.f32 %v703, %v731
        %733 = vmatmul.f32.gmra.mxu0 %v657
        %v734 = vpop.f32.mrf.mxu0
        %v735 = vadd.f32 %v703, %v734
        %736 = vmatmul.f32.gmra.mxu0 %v658
        %v737 = vpop.f32.mrf.mxu0
        %v738 = vadd.f32 %v703, %v737
        %739 = vmatmul.f32.gmra.mxu0 %v659
        %v740 = vpop.f32.mrf.mxu0
        %v741 = vadd.f32 %v703, %v740
        %742 = vmatmul.f32.gmra.mxu0 %v660
        %v743 = vpop.f32.mrf.mxu0
        %v744 = vadd.f32 %v703, %v743
        %745 = vmatmul.f32.gmra.mxu0 %v661
        %v746 = vpop.f32.mrf.mxu0
        %v747 = vadd.f32 %v703, %v746
        %748 = vmatmul.f32.gmra.mxu0 %v662
        %v749 = vpop.f32.mrf.mxu0
        %v750 = vadd.f32 %v703, %v749
        %751 = vmatmul.f32.gmra.mxu0 %v663
        %v752 = vpop.f32.mrf.mxu0
        %v753 = vadd.f32 %v703, %v752
        %754 = vmatmul.f32.gmra.mxu0 %v664
        %v755 = vpop.f32.mrf.mxu0
        %v756 = vadd.f32 %v703, %v755
        %757 = vmatmul.f32.gmra.mxu0 %v665
        %v758 = vpop.f32.mrf.mxu0
        %v759 = vadd.f32 %v703, %v758
        %760 = vmatmul.f32.gmra.mxu0 %v666
        %v761 = vpop.f32.mrf.mxu0
        %v762 = vadd.f32 %v703, %v761
        %763 = vmatmul.f32.gmra.mxu0 %v667
        %v764 = vpop.f32.mrf.mxu0
        %v765 = vadd.f32 %v703, %v764
        %766 = vmatmul.f32.gmra.mxu0 %v668
        %v767 = vpop.f32.mrf.mxu0
        %v768 = vadd.f32 %v703, %v767
        %769 = vmatmul.f32.gmra.mxu0 %v669
        %v770 = vpop.f32.mrf.mxu0
        %v771 = vadd.f32 %v703, %v770
        %772 = vmatmul.f32.gmra.mxu0 %v670
        %v773 = vpop.f32.mrf.mxu0
        %v774 = vadd.f32 %v703, %v773
        %775 = vmatmul.f32.gmra.mxu0 %v671
        %v776 = vpop.f32.mrf.mxu0
        %v777 = vadd.f32 %v703, %v776
        %778 = vmatmul.f32.gmra.mxu0 %v672
        %v779 = vpop.f32.mrf.mxu0
        %v780 = vadd.f32 %v703, %v779
        %781 = vmatmul.f32.gmra.mxu0 %v673
        %v782 = vpop.f32.mrf.mxu0
        %v783 = vadd.f32 %v703, %v782
        %784 = vmatmul.f32.gmra.mxu0 %v674
        %v785 = vpop.f32.mrf.mxu0
        %v786 = vadd.f32 %v703, %v785
        %787 = vmatmul.f32.gmra.mxu0 %v675
        %v788 = vpop.f32.mrf.mxu0
        %v789 = vadd.f32 %v703, %v788
        %790 = vmatmul.f32.gmra.mxu0 %v676
        %v791 = vpop.f32.mrf.mxu0
        %v792 = vadd.f32 %v703, %v791
        %793 = vmatmul.f32.gmra.mxu0 %v677
        %v794 = vpop.f32.mrf.mxu0
        %v795 = vadd.f32 %v703, %v794
        %796 = vmatmul.f32.gmra.mxu0 %v678
        %v797 = vpop.f32.mrf.mxu0
        %v798 = vadd.f32 %v703, %v797
        %799 = vmatmul.f32.gmra.mxu0 %v679
        %v800 = vpop.f32.mrf.mxu0
        %v801 = vadd.f32 %v703, %v800
        %802 = vmatmul.f32.gmra.mxu0 %v680
        %v803 = vpop.f32.mrf.mxu0
        %v804 = vadd.f32 %v703, %v803
        %805 = vmatmul.f32.gmra.mxu0 %v681
        %v806 = vpop.f32.mrf.mxu0
        %v807 = vadd.f32 %v703, %v806
        %808 = vmatmul.f32.gmra.mxu0 %v682
        %v809 = vpop.f32.mrf.mxu0
        %v810 = vadd.f32 %v703, %v809
        %811 = vmatmul.f32.gmra.mxu0 %v683
        %v812 = vpop.f32.mrf.mxu0
        %v813 = vadd.f32 %v703, %v812
        %814 = vmatmul.f32.gmra.mxu0 %v684
        %v815 = vpop.f32.mrf.mxu0
        %v816 = vadd.f32 %v703, %v815
        %817 = vdwg.mxu0
        %v818 = vmax.f32 %v723, 0.0
        %v819 = vmax.f32 %v726, 0.0
        %v820 = vmax.f32 %v729, 0.0
        %v821 = vmax.f32 %v732, 0.0
        %v822 = vmax.f32 %v735, 0.0
        %v823 = vmax.f32 %v738, 0.0
        %v824 = vmax.f32 %v741, 0.0
        %v825 = vmax.f32 %v744, 0.0
        %v826 = vmax.f32 %v747, 0.0
        %v827 = vmax.f32 %v750, 0.0
        %v828 = vmax.f32 %v753, 0.0
        %v829 = vmax.f32 %v756, 0.0
        %v830 = vmax.f32 %v759, 0.0
        %v831 = vmax.f32 %v762, 0.0
        %v832 = vmax.f32 %v765, 0.0
        %v833 = vmax.f32 %v768, 0.0
        %v834 = vmax.f32 %v771, 0.0
        %v835 = vmax.f32 %v774, 0.0
        %v836 = vmax.f32 %v777, 0.0
        %v837 = vmax.f32 %v780, 0.0
        %v838 = vmax.f32 %v783, 0.0
        %v839 = vmax.f32 %v786, 0.0
        %v840 = vmax.f32 %v789, 0.0
        %v841 = vmax.f32 %v792, 0.0
        %v842 = vmax.f32 %v795, 0.0
        %v843 = vmax.f32 %v798, 0.0
        %v844 = vmax.f32 %v801, 0.0
        %v845 = vmax.f32 %v804, 0.0
        %v846 = vmax.f32 %v807, 0.0
        %v847 = vmax.f32 %v810, 0.0
        %v848 = vmax.f32 %v813, 0.0
        %v849 = vmax.f32 %v816, 0.0
        %850 = vst [vmem:[%s292] sm:$0xff] %v818
        %851 = vst [vmem:[%s292 + $0x8] sm:$0xff] %v819
        %852 = vst [vmem:[%s292 + $0x10] sm:$0xff] %v820
        %853 = vst [vmem:[%s292 + $0x18] sm:$0xff] %v821
        %854 = vst [vmem:[%s292 + $0x20] sm:$0xff] %v822
        %855 = vst [vmem:[%s292 + $0x28] sm:$0xff] %v823
        %856 = vst [vmem:[%s292 + $0x30] sm:$0xff] %v824
        %857 = vst [vmem:[%s292 + $0x38] sm:$0xff] %v825
        %858 = vst [vmem:[%s292 + $0x40] sm:$0xff] %v826
        %859 = vst [vmem:[%s292 + $0x48] sm:$0xff] %v827
        %860 = vst [vmem:[%s292 + $0x50] sm:$0xff] %v828
        %861 = vst [vmem:[%s292 + $0x58] sm:$0xff] %v829
        %862 = vst [vmem:[%s292 + $0x60] sm:$0xff] %v830
        %863 = vst [vmem:[%s292 + $0x68] sm:$0xff] %v831
        %864 = vst [vmem:[%s292 + $0x70] sm:$0xff] %v832
        %865 = vst [vmem:[%s292 + $0x78] sm:$0xff] %v833
        %866 = vst [vmem:[%s292 + $0x80] sm:$0xff] %v834
        %867 = vst [vmem:[%s292 + $0x88] sm:$0xff] %v835
        %868 = vst [vmem:[%s292 + $0x90] sm:$0xff] %v836
        %869 = vst [vmem:[%s292 + $0x98] sm:$0xff] %v837
        %870 = vst [vmem:[%s292 + $0xa0] sm:$0xff] %v838
        %871 = vst [vmem:[%s292 + $0xa8] sm:$0xff] %v839
        %872 = vst [vmem:[%s292 + $0xb0] sm:$0xff] %v840
        %873 = vst [vmem:[%s292 + $0xb8] sm:$0xff] %v841
        %874 = vst [vmem:[%s292 + $0xc0] sm:$0xff] %v842
        %875 = vst [vmem:[%s292 + $0xc8] sm:$0xff] %v843
        %876 = vst [vmem:[%s292 + $0xd0] sm:$0xff] %v844
        %877 = vst [vmem:[%s292 + $0xd8] sm:$0xff] %v845
        %878 = vst [vmem:[%s292 + $0xe0] sm:$0xff] %v846
        %879 = vst [vmem:[%s292 + $0xe8] sm:$0xff] %v847
        %880 = vst [vmem:[%s292 + $0xf0] sm:$0xff] %v848
        %881 = vst [vmem:[%s292 + $0xf8] sm:$0xff] %v849
        %s882 = sand.u32 %s142, 1
        %s883 = scalar_lea.sflag [#allocation4], %s882
        %s884 = sand.u32 %s142, 1
        %s885 = smul.addr %s884, 256
        %s886 = scalar_lea.vmem [#allocation10], %s885
        // Predicated region
        $region57: #{tpu_custom_call.1} parent=39 // pred_check
          %p887 = pneg %p152
        $region58: #{tpu_custom_call.1} parent=39 // pred_check_branch
          %889 = sbr.rel (%p887) target = $region60
        $region59: #{tpu_custom_call.1} parent=39 // pred_region
          %s890 = smul.u32 32, %s24
          %892 = vsyncadd %s883, 0
          %s893 = smul.addr %s890, 8
          %s894 = scalar_lea.hbm %s5, %s893
          %s895 = sshll.u32 %s886, 4
          %s896 = int_to_ptr.vmem [resolvable:$true] %s895
          %s897 = sshll.u32 %s894, 4
          %s898 = int_to_ptr.hbm [resolvable:$true] %s897
          %903 = dma.vmem_to_hbm [thread:$0]  %s896, 4096, %s898, %s883, 128, 128, 8
        $region60: #{tpu_custom_call.1} parent=39 // pred_fallthru
          _
      $region40: #{tpu_custom_call.1} parent=5 // pred_fallthru
        _
      %p904 = scmp.le.s32.totalorder 2, %s19
      // Predicated region
      $region61: #{tpu_custom_call.1} parent=5 // pred_check
        %p905 = pneg %p904
      $region62: #{tpu_custom_call.1} parent=5 // pred_check_branch
        %907 = sbr.rel (%p905) target = $region64
      $region63: #{tpu_custom_call.1} parent=5 // pred_region
        %s908 = ssub.s32 %s19, 2
        // Predicated region
        $region65: #{tpu_custom_call.1} parent=63 // pred_check
          %p909 = pneg %p158
        $region66: #{tpu_custom_call.1} parent=63 // pred_check_branch
          %911 = sbr.rel (%p909) target = $region68
        $region67: #{tpu_custom_call.1} parent=63 // pred_region
          %s912 = sand.u32 %s143, 1
          %s913 = scalar_lea.sflag [#allocation4], %s912
          %s914 = sand.u32 %s143, 1
          %s915 = smul.addr %s914, 256
          %s916 = scalar_lea.vmem [#allocation10], %s915
          %918 = dma.done %s913, 4096
        $region68: #{tpu_custom_call.1} parent=63 // pred_fallthru
          _
      $region64: #{tpu_custom_call.1} parent=5 // pred_fallthru
        _
    $region6: #{tpu_custom_call.1} parent=1 // loop_footer
      %s23 = sadd.s32 1, %s19
    $region7: #{tpu_custom_call.1} parent=1 // loop_footer_branch
      %18 = sbr.rel target = $region3
    $region8: #{tpu_custom_call.1} parent=1 // loop_exit
      _
    %919 = vsyncpa [#allocation3], 1
    %s920 = scalar_lea.sflag [#allocation3], 1
    %921 = vsyncpa %s920, 1
    %922 = vsyncpa [#allocation6], 1
    %923 = vsyncpa [#allocation9], 1
    %924 = vsyncpa [#allocation4], 1
    %s925 = scalar_lea.sflag [#allocation4], 1
    %926 = vsyncpa %s925, 1

</llo_original>
